<compile_context>
chip_gen: v5e
topology: v5e:2x2
jax: 0.10.0
libtpu: 0.0.40
codegen_flags: <defaults>
</compile_context>

<pallas_src>
import jax
import jax.numpy as jnp
from jax.experimental import pallas as pl
from jax.experimental.pallas import tpu as pltpu

_LANES = 128
_SUBLANES = 8


def _round_up(x, m):
    return ((x + m - 1) // m) * m


# ----------------------------------------------------------------------------
# Kernel-side helpers
# ----------------------------------------------------------------------------
def _mlp(x, w1, b1, w2, b2):
    """MLP(in, 256, out): Linear -> LeakyReLU(0.0)==ReLU -> Linear (MXU path)."""
    h = jnp.dot(x, w1, preferred_element_type=jnp.float32) + b1
    h = jnp.maximum(h, 0.0)
    return jnp.dot(h, w2, preferred_element_type=jnp.float32) + b2


def cell_level_kernel(mail_ref, cell_ref,
                      w1s_ref, b1s_ref, w1n_ref, b1n_ref,
                      w2s_ref, w2n_ref, b2sum_ref,
                      out_ref):
    """Even level_id > 0 (no attention): cell_msg_reduce + apply_cell_func."""
    K = mail_ref.shape[0]

    # th.softmax(msg, dim=1) then (msg*w).sum(1), done K-major and fused:
    # every step below is a lane-dense (TN, D) elementwise VPU op.
    mmax = mail_ref[0]
    for k in range(1, K):
        mmax = jnp.maximum(mmax, mail_ref[k])
    num = jnp.zeros_like(mmax)
    den = jnp.zeros_like(mmax)
    for k in range(K):
        mk = mail_ref[k]
        e = jnp.exp(mk - mmax)                                # EUP
        den = den + e
        num = num + mk * e
    # exact reciprocal to stay within 1e-5 of the reference
    # (approx=True would push the divide onto the EUP at ~1e-3 rel err).
    h_neigh1 = num * pl.reciprocal(den, approx=False)         # (TN, D)

    # First Linear+ReLU of each MLP (different input widths -> separate dots).
    h1s = jnp.maximum(
        jnp.dot(cell_ref[...], w1s_ref[...],
                preferred_element_type=jnp.float32) + b1s_ref[...], 0.0)
    h1n = jnp.maximum(
        jnp.dot(h_neigh1, w1n_ref[...],
                preferred_element_type=jnp.float32) + b1n_ref[...], 0.0)

    # Second layers: two MXU dots accumulated + a single (pre-summed) bias.
    h = (jnp.dot(h1s, w2s_ref[...], preferred_element_type=jnp.float32)
         + jnp.dot(h1n, w2n_ref[...], preferred_element_type=jnp.float32)
         + b2sum_ref[...])
    # final self.activation = relu applied to pin data 'h'
    out_ref[...] = jnp.maximum(h, 0.0)


def net_level_kernel(mail_ref, net_ref,
                     w1_ref, b1_ref, w2_ref, b2_ref,
                     out_ref):
    """Odd level_id: fn.mean reduction + apply_net_func."""
    K = mail_ref.shape[0]
    acc = mail_ref[0]
    for k in range(1, K):
        acc = acc + mail_ref[k]
    h_neigh1 = acc * (1.0 / K)                                 # (TN, D)

    h_self = _mlp(net_ref[...], w1_ref[...], b1_ref[...],
                  w2_ref[...], b2_ref[...])                    # (TN, DOUT_PAD)

    pad = out_ref.shape[1] - h_neigh1.shape[1]
    if pad:
        h_neigh1 = jnp.pad(h_neigh1, ((0, 0), (0, pad)))
    out_ref[...] = jnp.maximum(h_self + h_neigh1, 0.0)


def level0_kernel(cell_ref, w1_ref, b1_ref, w2_ref, b2_ref, out_ref):
    """level_id == 0: apply_cell_func_level0 (h_neigh1 unused for 'h')."""
    h = _mlp(cell_ref[...], w1_ref[...], b1_ref[...], w2_ref[...], b2_ref[...])
    out_ref[...] = jnp.maximum(h, 0.0)


# ----------------------------------------------------------------------------
# BlockSpec helpers
# ----------------------------------------------------------------------------
def _spec_node_axis(block_shape, node_axis):
    """Tile only the node axis; every other axis takes the full array."""
    ndim = len(block_shape)

    def idx(i, _nd=ndim, _ax=node_axis):
        return tuple(i if d == _ax else 0 for d in range(_nd))

    return pl.BlockSpec(block_shape, idx)


def _full_spec(shape):
    """Whole array, same block every grid step (weights / biases)."""
    n = len(shape)
    return pl.BlockSpec(shape, lambda i, _n=n: (0,) * _n)


_COMPILER_PARAMS = pltpu.CompilerParams(
    dimension_semantics=("parallel",),
    vmem_limit_bytes=32 * 1024 * 1024,     # explicit; safe on v5e/v6e/v7x
)


# ----------------------------------------------------------------------------
# pallas_call wrappers
# ----------------------------------------------------------------------------
def _run_cell_level(mail_kmaj, cell_feat, w1s, b1s, w1n, b1n,
                    w2s, w2n, b2sum, *, tn, dout_pad):
    K, N, D = mail_kmaj.shape
    Dc = cell_feat.shape[1]
    return pl.pallas_call(
        cell_level_kernel,
        out_shape=jax.ShapeDtypeStruct((N, dout_pad), jnp.float32),
        grid=(pl.cdiv(N, tn),),
        in_specs=[
            _spec_node_axis((K, tn, D), 1),
            _spec_node_axis((tn, Dc), 0),
            _full_spec(w1s.shape), _full_spec(b1s.shape),
            _full_spec(w1n.shape), _full_spec(b1n.shape),
            _full_spec(w2s.shape), _full_spec(w2n.shape),
            _full_spec(b2sum.shape),
        ],
        out_specs=_spec_node_axis((tn, dout_pad), 0),
        compiler_params=_COMPILER_PARAMS,
    )(mail_kmaj, cell_feat, w1s, b1s, w1n, b1n, w2s, w2n, b2sum)


def _run_net_level(mail_kmaj, net_feat, w1, b1, w2p, b2p, *, tn, dout_pad):
    K, N, D = mail_kmaj.shape
    Dn = net_feat.shape[1]
    return pl.pallas_call(
        net_level_kernel,
        out_shape=jax.ShapeDtypeStruct((N, dout_pad), jnp.float32),
        grid=(pl.cdiv(N, tn),),
        in_specs=[
            _spec_node_axis((K, tn, D), 1),
            _spec_node_axis((tn, Dn), 0),
            _full_spec(w1.shape), _full_spec(b1.shape),
            _full_spec(w2p.shape), _full_spec(b2p.shape),
        ],
        out_specs=_spec_node_axis((tn, dout_pad), 0),
        compiler_params=_COMPILER_PARAMS,
    )(mail_kmaj, net_feat, w1, b1, w2p, b2p)


def _run_level0(cell_feat, w1, b1, w2p, b2p, *, tn, dout_pad):
    N, Dc = cell_feat.shape
    return pl.pallas_call(
        level0_kernel,
        out_shape=jax.ShapeDtypeStruct((N, dout_pad), jnp.float32),
        grid=(pl.cdiv(N, tn),),
        in_specs=[
            _spec_node_axis((tn, Dc), 0),
            _full_spec(w1.shape), _full_spec(b1.shape),
            _full_spec(w2p.shape), _full_spec(b2p.shape),
        ],
        out_specs=_spec_node_axis((tn, dout_pad), 0),
        compiler_params=_COMPILER_PARAMS,
    )(cell_feat, w1, b1, w2p, b2p)


# ----------------------------------------------------------------------------
# Wrapper: dense equivalent of PathConv.forward (flag_attn=False)
# ----------------------------------------------------------------------------
def _pad_out_weights(w2, b2, dout_pad):
    dout = w2.shape[1]
    if dout == dout_pad:
        return w2, b2
    pad = dout_pad - dout
    return (jnp.pad(w2, ((0, 0), (0, pad))),
            jnp.pad(b2, ((0, 0), (0, pad))))


def path_conv_forward(params, level_id, mailbox, cell_feat, net_feat,
                      targets, *, tn=256):
    """Returns h[targets] with h of shape (len(targets), out_feat_dim)."""
    N, K, D = mailbox.shape
    dout = params["cell_self"][2].shape[1]
    dout_pad = _round_up(dout, _LANES)

    # Node-axis tiling: cap the tile at the (sublane-padded) problem size and
    # zero-pad N so the grid covers every node (no silently dropped tail).
    tn_eff = min(tn, _round_up(N, _SUBLANES))
    n_pad = _round_up(N, tn_eff)

    def pad_n(x):
        if x.shape[0] == n_pad:
            return x
        return jnp.pad(
            x, ((0, n_pad - x.shape[0]),) + ((0, 0),) * (x.ndim - 1))

    if level_id % 2 == 1:
        w1, b1, w2, b2 = params["net_self"]
        w2p, b2p = _pad_out_weights(w2, b2, dout_pad)
        mail_kmaj = jnp.transpose(pad_n(mailbox), (1, 0, 2))   # (K, Npad, D)
        h = _run_net_level(mail_kmaj, pad_n(net_feat), w1, b1, w2p, b2p,
                           tn=tn_eff, dout_pad=dout_pad)
    elif level_id == 0:
        w1, b1, w2, b2 = params["cell_self"]
        w2p, b2p = _pad_out_weights(w2, b2, dout_pad)
        h = _run_level0(pad_n(cell_feat), w1, b1, w2p, b2p,
                        tn=tn_eff, dout_pad=dout_pad)
    else:
        w1s, b1s, w2s, b2s = params["cell_self"]
        w1n, b1n, w2n, b2n = params["cell_neigh"]
        w2sp, b2sp = _pad_out_weights(w2s, b2s, dout_pad)
        w2np, b2np = _pad_out_weights(w2n, b2n, dout_pad)
        b2sum = b2sp + b2np                                    # (1, Dout_pad)
        mail_kmaj = jnp.transpose(pad_n(mailbox), (1, 0, 2))   # (K, Npad, D)
        h = _run_cell_level(mail_kmaj, pad_n(cell_feat),
                            w1s, b1s, w1n, b1n, w2sp, w2np, b2sum,
                            tn=tn_eff, dout_pad=dout_pad)

    h = h[:N, :dout]
    return h[targets]


# ----------------------------------------------------------------------------
# Parameter init (deterministic, Glorot-ish uniform; weights stored (in, out))
# ----------------------------------------------------------------------------
def _init_mlp(key, d_in, d_hidden, d_out):
    k1, k2, k3, k4 = jax.random.split(key, 4)
    s1 = (6.0 / (d_in + d_hidden)) ** 0.5
    s2 = (6.0 / (d_hidden + d_out)) ** 0.5
    w1 = jax.random.uniform(k1, (d_in, d_hidden), jnp.float32, -s1, s1)
    b1 = jax.random.uniform(k2, (1, d_hidden), jnp.float32, -0.1, 0.1)
    w2 = jax.random.uniform(k3, (d_hidden, d_out), jnp.float32, -s2, s2)
    b2 = jax.random.uniform(k4, (1, d_out), jnp.float32, -0.1, 0.1)
    return (w1, b1, w2, b2)


# ----------------------------------------------------------------------------
# Pure-JAX reference (for verification)
# ----------------------------------------------------------------------------
def _ref_mlp(x, p):
    w1, b1, w2, b2 = p
    return jnp.maximum(x @ w1 + b1, 0.0) @ w2 + b2


def _ref_forward(params, level_id, mailbox, cell_feat, net_feat, targets):
    if level_id % 2 == 1:
        h_neigh1 = jnp.mean(mailbox, axis=1)
        h = _ref_mlp(net_feat, params["net_self"]) + h_neigh1
    elif level_id == 0:
        h = _ref_mlp(cell_feat, params["cell_self"])
    else:
        w = jax.nn.softmax(mailbox, axis=1)
        h_neigh1 = jnp.sum(mailbox * w, axis=1)
        h = (_ref_mlp(cell_feat, params["cell_self"])
             + _ref_mlp(h_neigh1, params["cell_neigh"]))
    return jnp.maximum(h, 0.0)[targets]


# ----------------------------------------------------------------------------
if __name__ == "__main__":
    # out_feat_dim == hidden_feat_dim == 32 (required by the residual-style
    # adds in the module), cell/net feature dims 16, MLP hidden 256, N = 40
    # nodes (deliberately NOT a multiple of the tile to exercise tail padding),
    # K = 4 neighbors each.
    OUT_DIM = 32
    HID_DIM = 32
    CELL_DIM = 16
    NET_DIM = 16
    MLP_HID = 256
    N, K = 40, 4

    key = jax.random.PRNGKey(0)
    k_p1, k_p2, k_p3, k_m, k_c, k_n = jax.random.split(key, 6)

    params = {
        "cell_neigh": _init_mlp(k_p1, HID_DIM, MLP_HID, OUT_DIM),
        "cell_self": _init_mlp(k_p2, CELL_DIM, MLP_HID, OUT_DIM),
        "net_self": _init_mlp(k_p3, NET_DIM, MLP_HID, OUT_DIM),
    }

    mailbox = jax.random.normal(k_m, (N, K, HID_DIM), jnp.float32)  # nbr h's
    cell_feat = jax.random.normal(k_c, (N, CELL_DIM), jnp.float32)
    net_feat = jax.random.normal(k_n, (N, NET_DIM), jnp.float32)
    targets = jnp.arange(0, N, 3, dtype=jnp.int32)

    ok = True
    # production default tn=256 (single capped tile) for every branch, plus a
    # tn=16 run of the heaviest branch to exercise the multi-step grid + the
    # non-divisible tail padding.
    configs = [(256, 0), (256, 1), (256, 2), (16, 2)]
    for tn, level_id in configs:
        out = path_conv_forward(params, level_id, mailbox, cell_feat,
                                net_feat, targets, tn=tn)
        out = jax.block_until_ready(out)
        ref = _ref_forward(params, level_id, mailbox, cell_feat,
                           net_feat, targets)
        ok &= bool(jnp.allclose(out, ref, rtol=1e-5, atol=1e-5))

    if ok:
        print("KERNEL_OK")
    else:
        raise SystemExit("mismatch vs reference")
</pallas_src>

<mosaic_0001>
module attributes {stable_mosaic.version = 11 : i64} {
  func.func @level0_kernel(%arg0: i32, %arg1: memref<40x16xf32, #tpu.memory_space<vmem>>, %arg2: memref<16x256xf32, #tpu.memory_space<vmem>>, %arg3: memref<1x256xf32, #tpu.memory_space<vmem>>, %arg4: memref<256x128xf32, #tpu.memory_space<vmem>>, %arg5: memref<1x128xf32, #tpu.memory_space<vmem>>, %arg6: memref<40x128xf32, #tpu.memory_space<vmem>>) attributes {dimension_semantics = [#tpu.dimension_semantics<parallel>], iteration_bounds = array<i64: 1>, scalar_prefetch = 0 : i64, scratch_operands = 0 : i64, tpu.core_type = #tpu.core_type<tc>, window_params = [{transform_indices = @transform_0, window_bounds = array<i64: 40, 16>}, {pipeline_mode = #tpu.pipeline_mode<synchronous>, transform_indices = @transform_1, window_bounds = array<i64: 16, 256>}, {pipeline_mode = #tpu.pipeline_mode<synchronous>, transform_indices = @transform_2, window_bounds = array<i64: 1, 256>}, {pipeline_mode = #tpu.pipeline_mode<synchronous>, transform_indices = @transform_3, window_bounds = array<i64: 256, 128>}, {pipeline_mode = #tpu.pipeline_mode<synchronous>, transform_indices = @transform_4, window_bounds = array<i64: 1, 128>}, {transform_indices = @transform_5, window_bounds = array<i64: 40, 128>}]} {
    %c0 = arith.constant 0 : index
    %c0_0 = arith.constant 0 : index
    %0 = vector.load %arg1[%c0, %c0_0] : memref<40x16xf32, #tpu.memory_space<vmem>>, vector<40x16xf32>
    %c0_1 = arith.constant 0 : index
    %c0_2 = arith.constant 0 : index
    %1 = vector.load %arg2[%c0_1, %c0_2] : memref<16x256xf32, #tpu.memory_space<vmem>>, vector<16x256xf32>
    %c0_3 = arith.constant 0 : index
    %c0_4 = arith.constant 0 : index
    %2 = vector.load %arg3[%c0_3, %c0_4] : memref<1x256xf32, #tpu.memory_space<vmem>>, vector<1x256xf32>
    %c0_5 = arith.constant 0 : index
    %c0_6 = arith.constant 0 : index
    %3 = vector.load %arg4[%c0_5, %c0_6] : memref<256x128xf32, #tpu.memory_space<vmem>>, vector<256x128xf32>
    %c0_7 = arith.constant 0 : index
    %c0_8 = arith.constant 0 : index
    %4 = vector.load %arg5[%c0_7, %c0_8] : memref<1x128xf32, #tpu.memory_space<vmem>>, vector<1x128xf32>
    %cst = arith.constant dense<0.000000e+00> : vector<40x256xf32>
    %5 = tpu.matmul %0, %1, %cst {dimension_numbers = #tpu.dot_dimension_numbers<[1], [0], [0], [1], [0, 0, 1, 1], [], []>} : vector<40x16xf32>, vector<16x256xf32>, vector<40x256xf32> -> vector<40x256xf32>
    %6 = vector.broadcast %2 : vector<1x256xf32> to vector<40x256xf32>
    %7 = arith.addf %5, %6 : vector<40x256xf32>
    %cst_9 = arith.constant 0.000000e+00 : f32
    %8 = vector.broadcast %cst_9 : f32 to vector<40x256xf32>
    %9 = arith.maximumf %7, %8 : vector<40x256xf32>
    %cst_10 = arith.constant dense<0.000000e+00> : vector<40x128xf32>
    %10 = tpu.matmul %9, %3, %cst_10 {dimension_numbers = #tpu.dot_dimension_numbers<[1], [0], [0], [1], [0, 0, 1, 1], [], []>} : vector<40x256xf32>, vector<256x128xf32>, vector<40x128xf32> -> vector<40x128xf32>
    %11 = vector.broadcast %4 : vector<1x128xf32> to vector<40x128xf32>
    %12 = arith.addf %10, %11 : vector<40x128xf32>
    %cst_11 = arith.constant 0.000000e+00 : f32
    %13 = vector.broadcast %cst_11 : f32 to vector<40x128xf32>
    %14 = arith.maximumf %12, %13 : vector<40x128xf32>
    %c0_12 = arith.constant 0 : index
    %c0_13 = arith.constant 0 : index
    %15 = vector.load %arg6[%c0_12, %c0_13] : memref<40x128xf32, #tpu.memory_space<vmem>>, vector<40x128xf32>
    tpu.vector_store %arg6[%c0_12, %c0_13], %14 {strides = array<i32>} : memref<40x128xf32, #tpu.memory_space<vmem>>, vector<40x128xf32>,
    return
  }
  func.func @transform_0(%arg0: i32) -> (i32, i32) {
    %c0_i32 = arith.constant 0 : i32
    %c0_i32_0 = arith.constant 0 : i32
    return %arg0, %c0_i32 : i32, i32
  }
  func.func @transform_1(%arg0: i32) -> (i32, i32) {
    %c0_i32 = arith.constant 0 : i32
    %c0_i32_0 = arith.constant 0 : i32
    %c0_i32_1 = arith.constant 0 : i32
    return %c0_i32, %c0_i32_0 : i32, i32
  }
  func.func @transform_2(%arg0: i32) -> (i32, i32) {
    %c0_i32 = arith.constant 0 : i32
    %c0_i32_0 = arith.constant 0 : i32
    %c0_i32_1 = arith.constant 0 : i32
    return %c0_i32, %c0_i32_0 : i32, i32
  }
  func.func @transform_3(%arg0: i32) -> (i32, i32) {
    %c0_i32 = arith.constant 0 : i32
    %c0_i32_0 = arith.constant 0 : i32
    %c0_i32_1 = arith.constant 0 : i32
    return %c0_i32, %c0_i32_0 : i32, i32
  }
  func.func @transform_4(%arg0: i32) -> (i32, i32) {
    %c0_i32 = arith.constant 0 : i32
    %c0_i32_0 = arith.constant 0 : i32
    %c0_i32_1 = arith.constant 0 : i32
    return %c0_i32, %c0_i32_0 : i32, i32
  }
  func.func @transform_5(%arg0: i32) -> (i32, i32) {
    %c0_i32 = arith.constant 0 : i32
    %c0_i32_0 = arith.constant 0 : i32
    return %arg0, %c0_i32 : i32, i32
  }
}

</mosaic_0001>

<llo_original>
// kernel: tpu_custom_call.1
$region0: #{tpu_custom_call.1}
  #allocation0 [shape = 'u32[]', space=smem, size = 0x4, offset = 0x4, fixed_abs, tag = 'smem constant byte address 0x4 - core index']
  #allocation1 [shape = 'u32[72,128]{1,0:T(1,128)}', space=vmem, size = 0x9000, scoped, tag = 'internal scratch']
  %s0 = inlined_call_operand.vmem [shape: f32[40,16], index: 0, kind: input, shape index: {}]
  %s1 = inlined_call_operand.vmem [shape: f32[16,256], index: 1, kind: input, shape index: {}]
  %s2 = inlined_call_operand.vmem [shape: f32[1,256], index: 2, kind: input, shape index: {}]
  %s3 = inlined_call_operand.hbm [shape: f32[256,128], index: 3, kind: input, shape index: {}]
  %s4 = inlined_call_operand.vmem [shape: f32[1,128], index: 4, kind: input, shape index: {}]
  %s5 = inlined_call_operand.hbm [shape: f32[40,128], index: 5, kind: output, shape index: {}]
  %s6 = sld [smem:[#allocation0]]
  $region34: #{tpu_custom_call.1} parent=0
    _
  %s8 = ssub.s32 1, %s6
  %s9 = scalar_select 0, %s8, %s6
  $region1: #{tpu_custom_call.1} parent=0
    #allocation2 [shape = 'u8[131072]{0}', space=vmem, size = 0x20000, scoped, tag = 'input window, operand 3, single buffered']
    #allocation3 [shape = 's32[1]{0}', space=sflag, size = 0x4, scoped, tag = 'scoped memory for tpu_custom_call.1']
    #allocation4 [shape = 's32[1]{0}', space=sflag, size = 0x4, scoped, tag = 'scoped memory for tpu_custom_call.1']
    #allocation5 [shape = 'u8[20480]{0}', space=vmem, size = 0x5000, scoped, tag = 'output window, operand 0, single buffered']
    %10 = vsyncpa [#allocation3], 0
    %11 = vsyncpa [#allocation4], 0
    // Predicated region
    $region2: #{tpu_custom_call.1} parent=1 // pred_check
      _
    $region3: #{tpu_custom_call.1} parent=1 // pred_check_branch
      %13 = sbr.rel (0) target = $region5
    $region4: #{tpu_custom_call.1} parent=1 // pred_region
      _
    $region5: #{tpu_custom_call.1} parent=1 // pred_fallthru
      _
    // Predicated region
    $region6: #{tpu_custom_call.1} parent=1 // pred_check
      _
    $region7: #{tpu_custom_call.1} parent=1 // pred_check_branch
      %15 = sbr.rel (0) target = $region9
    $region8: #{tpu_custom_call.1} parent=1 // pred_region
      _
    $region9: #{tpu_custom_call.1} parent=1 // pred_fallthru
      _
    // Predicated region
    $region10: #{tpu_custom_call.1} parent=1 // pred_check
      _
    $region11: #{tpu_custom_call.1} parent=1 // pred_check_branch
      %17 = sbr.rel (0) target = $region13
    $region12: #{tpu_custom_call.1} parent=1 // pred_region
      _
    $region13: #{tpu_custom_call.1} parent=1 // pred_fallthru
      _
    // Predicated region
    $region14: #{tpu_custom_call.1} parent=1 // pred_check
      _
    $region15: #{tpu_custom_call.1} parent=1 // pred_check_branch
      %19 = sbr.rel (0) target = $region17
    $region16: #{tpu_custom_call.1} parent=1 // pred_region
      %21 = vsyncadd [#allocation3], 0
      %s22 = sshll.u32 %s3, 4
      %s23 = int_to_ptr.hbm [resolvable:$true] %s22
      %s24 = sshll.u32 [#allocation2], 4
      %s25 = int_to_ptr.vmem [resolvable:$true] %s24
      %30 = dma.hbm_to_vmem [thread:$0]  %s23, 4096, %s25, [#allocation3], 128, 128, 8
    $region17: #{tpu_custom_call.1} parent=1 // pred_fallthru
      _
    // Predicated region
    $region18: #{tpu_custom_call.1} parent=1 // pred_check
      _
    $region19: #{tpu_custom_call.1} parent=1 // pred_check_branch
      %32 = sbr.rel (0) target = $region21
    $region20: #{tpu_custom_call.1} parent=1 // pred_region
      _
    $region21: #{tpu_custom_call.1} parent=1 // pred_fallthru
      _
    // Predicated region
    $region22: #{tpu_custom_call.1} parent=1 // pred_check
      _
    $region23: #{tpu_custom_call.1} parent=1 // pred_check_branch
      %34 = sbr.rel (0) target = $region25
    $region24: #{tpu_custom_call.1} parent=1 // pred_region
      %36 = dma.done [#allocation3], 4096
    $region25: #{tpu_custom_call.1} parent=1 // pred_fallthru
      _
    %v37 = vld [vmem:[%s0] sm:$0xff]
    %v38 = vld [vmem:[%s0 + $0x8] sm:$0xff]
    %v39 = vld [vmem:[%s0 + $0x10] sm:$0xff]
    %v40 = vld [vmem:[%s0 + $0x18] sm:$0xff]
    %v41 = vld [vmem:[%s0 + $0x20] sm:$0xff]
    %v42 = vld [vmem:[%s1] sm:$0xff]
    %v43 = vld [vmem:[%s1 + $0x8] sm:$0xff]
    %v44 = vld [vmem:[%s1 + $0x10] sm:$0xff]
    %v45 = vld [vmem:[%s1 + $0x18] sm:$0xff]
    %v46 = vld [vmem:[%s2] sm:$0x3]
    %v47 = vld [vmem:[#allocation2] sm:$0xff]
    %v48 = vld [vmem:[#allocation2 + $0x8] sm:$0xff]
    %v49 = vld [vmem:[#allocation2 + $0x10] sm:$0xff]
    %v50 = vld [vmem:[#allocation2 + $0x18] sm:$0xff]
    %v51 = vld [vmem:[#allocation2 + $0x20] sm:$0xff]
    %v52 = vld [vmem:[#allocation2 + $0x28] sm:$0xff]
    %v53 = vld [vmem:[#allocation2 + $0x30] sm:$0xff]
    %v54 = vld [vmem:[#allocation2 + $0x38] sm:$0xff]
    %v55 = vld [vmem:[#allocation2 + $0x40] sm:$0xff]
    %v56 = vld [vmem:[#allocation2 + $0x48] sm:$0xff]
    %v57 = vld [vmem:[#allocation2 + $0x50] sm:$0xff]
    %v58 = vld [vmem:[#allocation2 + $0x58] sm:$0xff]
    %v59 = vld [vmem:[#allocation2 + $0x60] sm:$0xff]
    %v60 = vld [vmem:[#allocation2 + $0x68] sm:$0xff]
    %v61 = vld [vmem:[#allocation2 + $0x70] sm:$0xff]
    %v62 = vld [vmem:[#allocation2 + $0x78] sm:$0xff]
    %v63 = vld [vmem:[#allocation2 + $0x80] sm:$0xff]
    %v64 = vld [vmem:[#allocation2 + $0x88] sm:$0xff]
    %v65 = vld [vmem:[#allocation2 + $0x90] sm:$0xff]
    %v66 = vld [vmem:[#allocation2 + $0x98] sm:$0xff]
    %v67 = vld [vmem:[#allocation2 + $0xa0] sm:$0xff]
    %v68 = vld [vmem:[#allocation2 + $0xa8] sm:$0xff]
    %v69 = vld [vmem:[#allocation2 + $0xb0] sm:$0xff]
    %v70 = vld [vmem:[#allocation2 + $0xb8] sm:$0xff]
    %v71 = vld [vmem:[#allocation2 + $0xc0] sm:$0xff]
    %v72 = vld [vmem:[#allocation2 + $0xc8] sm:$0xff]
    %v73 = vld [vmem:[#allocation2 + $0xd0] sm:$0xff]
    %v74 = vld [vmem:[#allocation2 + $0xd8] sm:$0xff]
    %v75 = vld [vmem:[#allocation2 + $0xe0] sm:$0xff]
    %v76 = vld [vmem:[#allocation2 + $0xe8] sm:$0xff]
    %v77 = vld [vmem:[#allocation2 + $0xf0] sm:$0xff]
    %v78 = vld [vmem:[#allocation2 + $0xf8] sm:$0xff]
    %v79 = vld [vmem:[%s4] sm:$0x1]
    %v81 = vperm.slane %v46, 0
    %v82 = vperm.slane %v46, 1
    %vm85 = vcmask 130048
    %v87 = vsel %vm85, %v37, 0
    %v90 = vsel %vm85, %v38, 0
    %v93 = vsel %vm85, %v39, 0
    %v96 = vsel %vm85, %v40, 0
    %v99 = vsel %vm85, %v41, 0
    %101 = vmatpush.msra.mxu0 0.0
    %102 = vmatpush.msra.mxu0 0.0
    %103 = vmatpush.msra.mxu0 0.0
    %104 = vmatpush.msra.mxu0 0.0
    %105 = vmatpush.msra.mxu0 0.0
    %106 = vmatpush.msra.mxu0 0.0
    %107 = vmatpush.msra.mxu0 0.0
    %108 = vmatpush.msra.mxu0 0.0
    %109 = vmatpush.msra.mxu0 0.0
    %110 = vmatpush.msra.mxu0 0.0
    %111 = vmatpush.msra.mxu0 0.0
    %112 = vmatpush.msra.mxu0 0.0
    %113 = vmatpush.msra.mxu0 0.0
    %114 = vmatpush.msra.mxu0 0.0
    %115 = vmatpush.msra.mxu0 %v44
    %116 = vmatpush.msra.mxu0 %v42
    %117 = vmatmul.f32.gmra.mxu0 %v87
    %v118 = vpop.f32.mrf.mxu0
    %v119 = vadd.f32 %v81, %v118
    %120 = vmatmul.f32.gmra.mxu0 %v90
    %v121 = vpop.f32.mrf.mxu0
    %v122 = vadd.f32 %v81, %v121
    %123 = vmatmul.f32.gmra.mxu0 %v93
    %v124 = vpop.f32.mrf.mxu0
    %v125 = vadd.f32 %v81, %v124
    %126 = vmatmul.f32.gmra.mxu0 %v96
    %v127 = vpop.f32.mrf.mxu0
    %v128 = vadd.f32 %v81, %v127
    %129 = vmatmul.f32.gmra.mxu0 %v99
    %v130 = vpop.f32.mrf.mxu0
    %v131 = vadd.f32 %v81, %v130
    %132 = vdwg.mxu0
    %133 = vmatpush.msra.mxu0 0.0
    %134 = vmatpush.msra.mxu0 0.0
    %135 = vmatpush.msra.mxu0 0.0
    %136 = vmatpush.msra.mxu0 0.0
    %137 = vmatpush.msra.mxu0 0.0
    %138 = vmatpush.msra.mxu0 0.0
    %139 = vmatpush.msra.mxu0 0.0
    %140 = vmatpush.msra.mxu0 0.0
    %141 = vmatpush.msra.mxu0 0.0
    %142 = vmatpush.msra.mxu0 0.0
    %143 = vmatpush.msra.mxu0 0.0
    %144 = vmatpush.msra.mxu0 0.0
    %145 = vmatpush.msra.mxu0 0.0
    %146 = vmatpush.msra.mxu0 0.0
    %147 = vmatpush.msra.mxu0 %v45
    %148 = vmatpush.msra.mxu0 %v43
    %149 = vmatmul.f32.gmra.mxu0 %v87
    %v150 = vpop.f32.mrf.mxu0
    %v151 = vadd.f32 %v82, %v150
    %152 = vmatmul.f32.gmra.mxu0 %v90
    %v153 = vpop.f32.mrf.mxu0
    %v154 = vadd.f32 %v82, %v153
    %155 = vmatmul.f32.gmra.mxu0 %v93
    %v156 = vpop.f32.mrf.mxu0
    %v157 = vadd.f32 %v82, %v156
    %158 = vmatmul.f32.gmra.mxu0 %v96
    %v159 = vpop.f32.mrf.mxu0
    %v160 = vadd.f32 %v82, %v159
    %161 = vmatmul.f32.gmra.mxu0 %v99
    %v162 = vpop.f32.mrf.mxu0
    %v163 = vadd.f32 %v82, %v162
    %164 = vdwg.mxu0
    %v165 = vmax.f32 %v119, 0.0
    %v166 = vmax.f32 %v151, 0.0
    %v167 = vmax.f32 %v122, 0.0
    %v168 = vmax.f32 %v154, 0.0
    %v169 = vmax.f32 %v125, 0.0
    %v170 = vmax.f32 %v157, 0.0
    %v171 = vmax.f32 %v128, 0.0
    %v172 = vmax.f32 %v160, 0.0
    %v173 = vmax.f32 %v131, 0.0
    %v174 = vmax.f32 %v163, 0.0
    %v176 = vperm.slane %v79, 0
    %178 = vmatpush.msra.mxu0 %v62
    %179 = vmatpush.msra.mxu0 %v61
    %180 = vmatpush.msra.mxu0 %v60
    %181 = vmatpush.msra.mxu0 %v59
    %182 = vmatpush.msra.mxu0 %v58
    %183 = vmatpush.msra.mxu0 %v57
    %184 = vmatpush.msra.mxu0 %v56
    %185 = vmatpush.msra.mxu0 %v55
    %186 = vmatpush.msra.mxu0 %v54
    %187 = vmatpush.msra.mxu0 %v53
    %188 = vmatpush.msra.mxu0 %v52
    %189 = vmatpush.msra.mxu0 %v51
    %190 = vmatpush.msra.mxu0 %v50
    %191 = vmatpush.msra.mxu0 %v49
    %192 = vmatpush.msra.mxu0 %v48
    %193 = vmatpush.msra.mxu0 %v47
    %194 = vmatmul.f32.gmra.mxu0 %v165
    %v195 = vpop.f32.mrf.mxu0
    %v196 = vadd.f32 %v176, %v195
    %197 = vmatmul.f32.gmra.mxu0 %v167
    %v198 = vpop.f32.mrf.mxu0
    %v199 = vadd.f32 %v176, %v198
    %200 = vmatmul.f32.gmra.mxu0 %v169
    %v201 = vpop.f32.mrf.mxu0
    %v202 = vadd.f32 %v176, %v201
    %203 = vmatmul.f32.gmra.mxu0 %v171
    %v204 = vpop.f32.mrf.mxu0
    %v205 = vadd.f32 %v176, %v204
    %206 = vmatmul.f32.gmra.mxu0 %v173
    %v207 = vpop.f32.mrf.mxu0
    %v208 = vadd.f32 %v176, %v207
    %209 = vdwg.mxu0
    %210 = vmatpush.msra.mxu0 %v78
    %211 = vmatpush.msra.mxu0 %v77
    %212 = vmatpush.msra.mxu0 %v76
    %213 = vmatpush.msra.mxu0 %v75
    %214 = vmatpush.msra.mxu0 %v74
    %215 = vmatpush.msra.mxu0 %v73
    %216 = vmatpush.msra.mxu0 %v72
    %217 = vmatpush.msra.mxu0 %v71
    %218 = vmatpush.msra.mxu0 %v70
    %219 = vmatpush.msra.mxu0 %v69
    %220 = vmatpush.msra.mxu0 %v68
    %221 = vmatpush.msra.mxu0 %v67
    %222 = vmatpush.msra.mxu0 %v66
    %223 = vmatpush.msra.mxu0 %v65
    %224 = vmatpush.msra.mxu0 %v64
    %225 = vmatpush.msra.mxu0 %v63
    %226 = vmatmul.f32.gmra.mxu0 %v166
    %v227 = vpop.f32.mrf.mxu0
    %v228 = vadd.f32 %v196, %v227
    %229 = vmatmul.f32.gmra.mxu0 %v168
    %v230 = vpop.f32.mrf.mxu0
    %v231 = vadd.f32 %v199, %v230
    %232 = vmatmul.f32.gmra.mxu0 %v170
    %v233 = vpop.f32.mrf.mxu0
    %v234 = vadd.f32 %v202, %v233
    %235 = vmatmul.f32.gmra.mxu0 %v172
    %v236 = vpop.f32.mrf.mxu0
    %v237 = vadd.f32 %v205, %v236
    %238 = vmatmul.f32.gmra.mxu0 %v174
    %v239 = vpop.f32.mrf.mxu0
    %v240 = vadd.f32 %v208, %v239
    %241 = vdwg.mxu0
    %v242 = vmax.f32 %v228, 0.0
    %v243 = vmax.f32 %v231, 0.0
    %v244 = vmax.f32 %v234, 0.0
    %v245 = vmax.f32 %v237, 0.0
    %v246 = vmax.f32 %v240, 0.0
    %247 = vst [vmem:[#allocation5] sm:$0xff] %v242
    %248 = vst [vmem:[#allocation5 + $0x8] sm:$0xff] %v243
    %249 = vst [vmem:[#allocation5 + $0x10] sm:$0xff] %v244
    %250 = vst [vmem:[#allocation5 + $0x18] sm:$0xff] %v245
    %251 = vst [vmem:[#allocation5 + $0x20] sm:$0xff] %v246
    // Predicated region
    $region26: #{tpu_custom_call.1} parent=1 // pred_check
      _
    $region27: #{tpu_custom_call.1} parent=1 // pred_check_branch
      %253 = sbr.rel (0) target = $region29
    $region28: #{tpu_custom_call.1} parent=1 // pred_region
      %255 = vsyncadd [#allocation4], 0
      %s256 = sshll.u32 [#allocation5], 4
      %s257 = int_to_ptr.vmem [resolvable:$true] %s256
      %s258 = sshll.u32 %s5, 4
      %s259 = int_to_ptr.hbm [resolvable:$true] %s258
      %264 = dma.vmem_to_hbm [thread:$0]  %s257, 640, %s259, [#allocation4], 128, 128, 8
    $region29: #{tpu_custom_call.1} parent=1 // pred_fallthru
      _
    // Predicated region
    $region30: #{tpu_custom_call.1} parent=1 // pred_check
      _
    $region31: #{tpu_custom_call.1} parent=1 // pred_check_branch
      %266 = sbr.rel (0) target = $region33
    $region32: #{tpu_custom_call.1} parent=1 // pred_region
      %268 = dma.done [#allocation4], 640
    $region33: #{tpu_custom_call.1} parent=1 // pred_fallthru
      _
    %269 = vsyncpa [#allocation3], 1
    %270 = vsyncpa [#allocation4], 1

</llo_original>
